<compile_context>
chip_gen: v7x
topology: tpu7x:2x2x1
jax: 0.10.0
libtpu: 0.0.40
codegen_flags: <defaults>
</compile_context>

<pallas_src>
import functools

import jax
import jax.numpy as jnp
from jax import lax
from jax.experimental import pallas as pl
from jax.experimental.pallas import tpu as pltpu

BN_EPS = 1e-5


def _round_up(x, m):
    return ((x + m - 1) // m) * m


# ---------------------------------------------------------------------------
# Kernel: fused (scaled-Linear + BN-shift + ReLU + Linear) over a row tile.
# ---------------------------------------------------------------------------
def _embed_kernel(x_ref, w1s_ref, shift_ref, w2_ref, o_ref, *, c, mxu_bf16):
    x = x_ref[...]                                    # (tile_n, c_pad) f32
    # c <= 4 projection on the VPU (broadcast-FMAs); a K=c MXU dot would cost as
    # many vmatmul pushes as the real F x F matmul below.
    h = x[:, 0:1] * w1s_ref[0:1, :]                   # (tile_n, f_pad)
    for k in range(1, c):                             # static unroll (c is tiny)
        h = h + x[:, k:k + 1] * w1s_ref[k:k + 1, :]
    h = jnp.maximum(h + shift_ref[...], 0.0)          # folded BN shift + ReLU
    if mxu_bf16:
        h = h.astype(jnp.bfloat16)                    # full-rate MXU on v6e/v7x
    out = jnp.dot(h, w2_ref[...], preferred_element_type=jnp.float32)
    o_ref[...] = out.astype(o_ref.dtype)


# ---------------------------------------------------------------------------
# Wrapper
# ---------------------------------------------------------------------------
def position_embedding_learned(xyz, w1, gamma, beta, w2, *, tile_n=2048,
                               use_bf16_mxu=False, out_dtype=jnp.float32):
    """xyz: (b, q, c).  w1: (c, F), w2: (F, F) (i.e. torch weight.T), gamma/beta: (F,).

    Returns (b, q, F), matching the PyTorch module (BatchNorm1d in training mode).
    """
    b, q, c = xyz.shape
    n = b * q
    f = w1.shape[1]

    f_pad = _round_up(f, 128)          # lane-dense output stores
    c_pad = _round_up(c, 8)            # 32 B x-rows for DMA granularity

    # ---- row tiling: NO row padding; the last partial block is masked by Pallas.
    if n <= 8:
        tile_n = n
    else:
        tile_n = _round_up(min(int(tile_n), n), 8)
        if pl.cdiv(n, tile_n) < 2:     # give both v7x TensorCores work when possible
            tile_n = _round_up(pl.cdiv(n, 2), 8)
    num_tiles = pl.cdiv(n, tile_n)

    # ---- exact BN batch stats via the Gram-matrix shortcut (tiny, plain JAX) ----
    hp = lax.Precision.HIGHEST
    x2d = xyz.reshape(n, c).astype(jnp.float32)
    w1f = w1.astype(jnp.float32)
    mean_x = jnp.mean(x2d, axis=0, keepdims=True)                     # (1, c)
    xc = x2d - mean_x
    gram = jnp.dot(xc.T, xc, precision=hp)                            # (c, c)
    mean_h = jnp.dot(mean_x, w1f, precision=hp)                       # (1, f)
    var_h = jnp.sum(jnp.dot(gram, w1f, precision=hp) * w1f,
                    axis=0, keepdims=True) / jnp.float32(n)           # centered var
    var_h = jnp.maximum(var_h, 0.0)
    scale = gamma.astype(jnp.float32).reshape(1, f) * lax.rsqrt(var_h + BN_EPS)
    shift = beta.astype(jnp.float32).reshape(1, f) - mean_h * scale

    # ---- fold scale into w1; pad operands (weights stay VMEM-resident) ---------
    mm_dtype = jnp.bfloat16 if use_bf16_mxu else jnp.float32
    w1s = jnp.pad(w1f * scale, ((0, c_pad - c), (0, f_pad - f)))      # (c_pad, f_pad)
    shiftp = jnp.pad(shift, ((0, 0), (0, f_pad - f)))                 # (1, f_pad)
    w2p = jnp.pad(w2.astype(jnp.float32),
                  ((0, f_pad - f), (0, f_pad - f))).astype(mm_dtype)  # (f_pad, f_pad)
    xp = jnp.pad(x2d, ((0, 0), (0, c_pad - c))) if c_pad != c else x2d

    # ---- VMEM budget: derived from hardware capacity with headroom (v7x: 64 MiB)
    out_it = jnp.dtype(out_dtype).itemsize
    mm_it = jnp.dtype(mm_dtype).itemsize
    x_tile_b = tile_n * max(c_pad, 128) * 4           # minor dim lane-padded in VMEM
    out_tile_b = tile_n * f_pad * 4
    resident_b = (c_pad * f_pad + f_pad) * 4 + f_pad * f_pad * mm_it
    need = 2 * (x_tile_b + out_tile_b) + 2 * resident_b
    try:
        vmem_cap = int(getattr(pltpu.get_tpu_info(), "vmem_capacity_bytes",
                               64 * 1024 * 1024))
    except Exception:
        vmem_cap = 64 * 1024 * 1024                   # conservative (v7x-sized)
    vmem_limit = int(min(max(2 * need, 16 * 1024 * 1024), (3 * vmem_cap) // 4))

    # NOTE: the in-kernel jnp.dot uses default matmul precision.  On some TPU
    # generations the f32 path may run as reduced-precision MXU passes; set
    # use_bf16_mxu=True deliberately when speed matters more than f32 fidelity.
    out = pl.pallas_call(
        functools.partial(_embed_kernel, c=c, mxu_bf16=use_bf16_mxu),
        out_shape=jax.ShapeDtypeStruct((n, f_pad), out_dtype),
        grid_spec=pltpu.PrefetchScalarGridSpec(
            num_scalar_prefetch=0,
            grid=(num_tiles,),
            in_specs=[
                pl.BlockSpec((tile_n, c_pad), lambda i: (i, 0)),
                pl.BlockSpec((c_pad, f_pad), lambda i: (0, 0)),   # resident
                pl.BlockSpec((1, f_pad), lambda i: (0, 0)),       # resident
                pl.BlockSpec((f_pad, f_pad), lambda i: (0, 0)),   # resident
            ],
            out_specs=pl.BlockSpec((tile_n, f_pad), lambda i: (i, 0)),
        ),
        compiler_params=pltpu.CompilerParams(
            dimension_semantics=("parallel",),        # independent row tiles
            vmem_limit_bytes=vmem_limit,
        ),
        cost_estimate=pl.CostEstimate(
            flops=2 * n * f_pad * f_pad + n * f_pad * (2 * c + 2),
            transcendentals=0,
            bytes_accessed=(n * c_pad * 4 + n * f_pad * out_it
                            + (c_pad * f_pad + f_pad) * 4 + f_pad * f_pad * mm_it),
        ),
    )(xp, w1s, shiftp, w2p)

    if f_pad != f:
        out = out[:, :f]
    return out.reshape(b, q, f)


# ---------------------------------------------------------------------------
# Reference (true-f32) + init helpers
# ---------------------------------------------------------------------------
def _xavier_uniform(key, fan_in, fan_out):
    # torch.nn.init.xavier_uniform_ (gain=1); stored as (fan_in, fan_out) == weight.T
    limit = (6.0 / (fan_in + fan_out)) ** 0.5
    return jax.random.uniform(key, (fan_in, fan_out), jnp.float32, -limit, limit)


def _reference(xyz, w1, gamma, beta, w2):
    b, q, c = xyz.shape
    hp = lax.Precision.HIGHEST
    x = xyz.reshape(b * q, c).astype(jnp.float32)
    h = jnp.dot(x, w1, precision=hp)
    mean = h.mean(axis=0, keepdims=True)
    var = jnp.mean((h - mean) ** 2, axis=0, keepdims=True)   # biased (training BN)
    h = (h - mean) / jnp.sqrt(var + BN_EPS) * gamma.reshape(1, -1) + beta.reshape(1, -1)
    h = jnp.maximum(h, 0.0)
    return jnp.dot(h, w2, precision=hp).reshape(b, q, -1)


if __name__ == "__main__":
    key = jax.random.PRNGKey(0)
    k_x, k_w1, k_w2, k_x2, k_w1b, k_w2b, k_g, k_b = jax.random.split(key, 8)

    # ---- test 1: fresh-module small shapes (gamma=1, beta=0), f < 128 pad path ----
    B, Q, C, F = 2, 8, 4, 32
    xyz = jax.random.normal(k_x, (B, Q, C), jnp.float32)
    w1 = _xavier_uniform(k_w1, C, F)
    w2 = _xavier_uniform(k_w2, F, F)
    gamma = jnp.ones((F,), jnp.float32)
    beta = jnp.zeros((F,), jnp.float32)

    out = jax.block_until_ready(position_embedding_learned(xyz, w1, gamma, beta, w2))
    ref = _reference(xyz, w1, gamma, beta, w2)
    assert out.shape == (B, Q, F)
    # tolerance covers possible reduced-precision MXU passes for f32 matmuls
    assert jnp.allclose(out, ref, atol=2e-2, rtol=2e-2)

    # ---- test 2: multi-tile + partial final row block, F=128 (no post-slice) ------
    B2, Q2, C2, F2 = 2, 40, 3, 128
    xyz2 = jax.random.normal(k_x2, (B2, Q2, C2), jnp.float32)
    w1b = _xavier_uniform(k_w1b, C2, F2)
    w2b = _xavier_uniform(k_w2b, F2, F2)
    gamma2 = jax.random.uniform(k_g, (F2,), jnp.float32, 0.5, 1.5)
    beta2 = jax.random.normal(k_b, (F2,), jnp.float32) * 0.1

    out2 = jax.block_until_ready(
        position_embedding_learned(xyz2, w1b, gamma2, beta2, w2b, tile_n=32))
    ref2 = _reference(xyz2, w1b, gamma2, beta2, w2b)
    assert out2.shape == (B2, Q2, F2)
    assert jnp.allclose(out2, ref2, atol=2e-2, rtol=2e-2)

    # ---- test 3: bf16 MXU-input path (v6e/v7x fast path), loose sanity check ------
    out3 = jax.block_until_ready(
        position_embedding_learned(xyz2, w1b, gamma2, beta2, w2b,
                                   tile_n=32, use_bf16_mxu=True))
    assert out3.shape == (B2, Q2, F2)
    assert jnp.allclose(out3, ref2, atol=1e-1, rtol=1e-1)

    print("KERNEL_OK")
</pallas_src>

<mosaic_0001>
module attributes {stable_mosaic.version = 11 : i64} {
  func.func @_embed_kernel(%arg0: i32, %arg1: memref<8x8xf32, #tpu.memory_space<vmem>>, %arg2: memref<8x128xf32, #tpu.memory_space<vmem>>, %arg3: memref<1x128xf32, #tpu.memory_space<vmem>>, %arg4: memref<128x128xf32, #tpu.memory_space<vmem>>, %arg5: memref<8x128xf32, #tpu.memory_space<vmem>>) attributes {dimension_semantics = [#tpu.dimension_semantics<parallel>], iteration_bounds = array<i64: 2>, scalar_prefetch = 0 : i64, scratch_operands = 0 : i64, tpu.core_type = #tpu.core_type<tc>, window_params = [{transform_indices = @transform_0, window_bounds = array<i64: 8, 8>}, {pipeline_mode = #tpu.pipeline_mode<synchronous>, transform_indices = @transform_1, window_bounds = array<i64: 8, 128>}, {pipeline_mode = #tpu.pipeline_mode<synchronous>, transform_indices = @transform_2, window_bounds = array<i64: 1, 128>}, {pipeline_mode = #tpu.pipeline_mode<synchronous>, transform_indices = @transform_3, window_bounds = array<i64: 128, 128>}, {transform_indices = @transform_4, window_bounds = array<i64: 8, 128>}]} {
    %c0 = arith.constant 0 : index
    %c0_0 = arith.constant 0 : index
    %0 = vector.load %arg1[%c0, %c0_0] : memref<8x8xf32, #tpu.memory_space<vmem>>, vector<8x8xf32>
    %1 = vector.extract_strided_slice %0 {offsets = [0, 0], sizes = [8, 1], strides = [1, 1]} : vector<8x8xf32> to vector<8x1xf32>
    %c0_1 = arith.constant 0 : index
    %c0_2 = arith.constant 0 : index
    %2 = vector.load %arg2[%c0_1, %c0_2] : memref<8x128xf32, #tpu.memory_space<vmem>>, vector<1x128xf32>
    %3 = vector.broadcast %1 : vector<8x1xf32> to vector<8x128xf32>
    %4 = vector.broadcast %2 : vector<1x128xf32> to vector<8x128xf32>
    %5 = arith.mulf %3, %4 : vector<8x128xf32>
    %6 = vector.extract_strided_slice %0 {offsets = [0, 1], sizes = [8, 1], strides = [1, 1]} : vector<8x8xf32> to vector<8x1xf32>
    %c1 = arith.constant 1 : index
    %c0_3 = arith.constant 0 : index
    %7 = vector.load %arg2[%c1, %c0_3] : memref<8x128xf32, #tpu.memory_space<vmem>>, vector<1x128xf32>
    %8 = vector.broadcast %6 : vector<8x1xf32> to vector<8x128xf32>
    %9 = vector.broadcast %7 : vector<1x128xf32> to vector<8x128xf32>
    %10 = arith.mulf %8, %9 : vector<8x128xf32>
    %11 = arith.addf %5, %10 : vector<8x128xf32>
    %12 = vector.extract_strided_slice %0 {offsets = [0, 2], sizes = [8, 1], strides = [1, 1]} : vector<8x8xf32> to vector<8x1xf32>
    %c2 = arith.constant 2 : index
    %c0_4 = arith.constant 0 : index
    %13 = vector.load %arg2[%c2, %c0_4] : memref<8x128xf32, #tpu.memory_space<vmem>>, vector<1x128xf32>
    %14 = vector.broadcast %12 : vector<8x1xf32> to vector<8x128xf32>
    %15 = vector.broadcast %13 : vector<1x128xf32> to vector<8x128xf32>
    %16 = arith.mulf %14, %15 : vector<8x128xf32>
    %17 = arith.addf %11, %16 : vector<8x128xf32>
    %18 = vector.extract_strided_slice %0 {offsets = [0, 3], sizes = [8, 1], strides = [1, 1]} : vector<8x8xf32> to vector<8x1xf32>
    %c3 = arith.constant 3 : index
    %c0_5 = arith.constant 0 : index
    %19 = vector.load %arg2[%c3, %c0_5] : memref<8x128xf32, #tpu.memory_space<vmem>>, vector<1x128xf32>
    %20 = vector.broadcast %18 : vector<8x1xf32> to vector<8x128xf32>
    %21 = vector.broadcast %19 : vector<1x128xf32> to vector<8x128xf32>
    %22 = arith.mulf %20, %21 : vector<8x128xf32>
    %23 = arith.addf %17, %22 : vector<8x128xf32>
    %c0_6 = arith.constant 0 : index
    %c0_7 = arith.constant 0 : index
    %24 = vector.load %arg3[%c0_6, %c0_7] : memref<1x128xf32, #tpu.memory_space<vmem>>, vector<1x128xf32>
    %25 = vector.broadcast %24 : vector<1x128xf32> to vector<8x128xf32>
    %26 = arith.addf %23, %25 : vector<8x128xf32>
    %cst = arith.constant 0.000000e+00 : f32
    %27 = vector.broadcast %cst : f32 to vector<8x128xf32>
    %28 = arith.maximumf %26, %27 : vector<8x128xf32>
    %c0_8 = arith.constant 0 : index
    %c0_9 = arith.constant 0 : index
    %29 = vector.load %arg4[%c0_8, %c0_9] : memref<128x128xf32, #tpu.memory_space<vmem>>, vector<128x128xf32>
    %cst_10 = arith.constant dense<0.000000e+00> : vector<8x128xf32>
    %30 = tpu.matmul %28, %29, %cst_10 {dimension_numbers = #tpu.dot_dimension_numbers<[1], [0], [0], [1], [0, 0, 1, 1], [], []>} : vector<8x128xf32>, vector<128x128xf32>, vector<8x128xf32> -> vector<8x128xf32>
    %c0_11 = arith.constant 0 : index
    %c0_12 = arith.constant 0 : index
    %31 = vector.load %arg5[%c0_11, %c0_12] : memref<8x128xf32, #tpu.memory_space<vmem>>, vector<8x128xf32>
    tpu.vector_store %arg5[%c0_11, %c0_12], %30 {strides = array<i32>} : memref<8x128xf32, #tpu.memory_space<vmem>>, vector<8x128xf32>,
    return
  }
  func.func @transform_0(%arg0: i32) -> (i32, i32) {
    %c0_i32 = arith.constant 0 : i32
    %c0_i32_0 = arith.constant 0 : i32
    return %arg0, %c0_i32 : i32, i32
  }
  func.func @transform_1(%arg0: i32) -> (i32, i32) {
    %c0_i32 = arith.constant 0 : i32
    %c0_i32_0 = arith.constant 0 : i32
    %c0_i32_1 = arith.constant 0 : i32
    return %c0_i32, %c0_i32_0 : i32, i32
  }
  func.func @transform_2(%arg0: i32) -> (i32, i32) {
    %c0_i32 = arith.constant 0 : i32
    %c0_i32_0 = arith.constant 0 : i32
    %c0_i32_1 = arith.constant 0 : i32
    return %c0_i32, %c0_i32_0 : i32, i32
  }
  func.func @transform_3(%arg0: i32) -> (i32, i32) {
    %c0_i32 = arith.constant 0 : i32
    %c0_i32_0 = arith.constant 0 : i32
    %c0_i32_1 = arith.constant 0 : i32
    return %c0_i32, %c0_i32_0 : i32, i32
  }
  func.func @transform_4(%arg0: i32) -> (i32, i32) {
    %c0_i32 = arith.constant 0 : i32
    %c0_i32_0 = arith.constant 0 : i32
    return %arg0, %c0_i32 : i32, i32
  }
}

</mosaic_0001>

<llo_original>
// kernel: tpu_custom_call.1
$region0: #{tpu_custom_call.1}
  #allocation0 [shape = 'u32[]', space=smem, size = 0x4, offset = 0x4, fixed_abs, tag = 'smem constant byte address 0x4 - core index']
  #allocation1 [shape = 'u32[144,128]{1,0:T(1,128)}', space=vmem, size = 0x12000, scoped, tag = 'internal scratch']
  %s0 = inlined_call_operand.vmem [shape: f32[16,8], index: 0, kind: input, shape index: {}]
  %s1 = inlined_call_operand.vmem [shape: f32[8,128], index: 1, kind: input, shape index: {}]
  %s2 = inlined_call_operand.vmem [shape: f32[1,128], index: 2, kind: input, shape index: {}]
  %s3 = inlined_call_operand.hbm [shape: f32[128,128], index: 3, kind: input, shape index: {}]
  %s4 = inlined_call_operand.hbm [shape: f32[16,128], index: 4, kind: output, shape index: {}]
  %s5 = sld [smem:[#allocation0]]
  $region53: #{tpu_custom_call.1} parent=0
    _
  %s7 = ssub.s32 1, %s5
  %s8 = scalar_select 0, %s7, %s5
  $region1: #{tpu_custom_call.1} parent=0
    #allocation2 [shape = 'u8[65536]{0}', space=vmem, size = 0x10000, scoped, tag = 'input window, operand 3, single buffered']
    #allocation3 [shape = 's32[2]{0}', space=sflag, size = 0x8, scoped, tag = 'scoped memory for tpu_custom_call.1']
    #allocation4 [shape = 's32[2]{0}', space=sflag, size = 0x8, scoped, tag = 'scoped memory for tpu_custom_call.1']
    #allocation5 [shape = 'u8[8192]{0}', space=vmem, size = 0x2000, scoped, tag = 'output window, operand 0']
    %9 = vsyncpa [#allocation3], 0
    %10 = vsyncpa [#allocation4], 0
    %s11 = scalar_lea.sflag [#allocation4], 1
    %12 = vsyncpa %s11, 0
    loop: start=0, step=1, limit=4
    $region2: #{tpu_custom_call.1} parent=1 // loop_pre_header
      _
    $region3: #{tpu_custom_call.1} parent=1 // loop_header
      %s14 = sphi 0, %s18
      %p15 = scmp.ge.s32.totalorder %s14, 4
      %s24 = sphi 0, %s26
      %s27 = sphi 0, %s24
      %s28 = sphi 0, %s27
      %s44 = sphi 0, %s28
      %s48 = sphi 0, %s48
      %s50 = sphi 0, %s48
      %s51 = sphi 0, %s50
      %s65 = sphi 0, %s51
      %s69 = sphi 0, %s69
      %s71 = sphi 0, %s69
      %s72 = sphi 0, %s71
      %s86 = sphi 0, %s72
      %s90 = sphi 0, %s90
      %s92 = sphi 0, %s90
      %s93 = sphi 0, %s92
      %s107 = sphi 0, %s93
      %s113 = sphi 0, %s115
      %s116 = sphi 0, %s113
      %s117 = sphi 0, %s116
      %s133 = sphi 0, %s117
    $region4: #{tpu_custom_call.1} parent=1 // loop_header_branch
      %17 = sbr.rel (%p15) target = $region8
    $region5: #{tpu_custom_call.1} parent=1 // loop_body
      %s19 = ssub.s32 %s14, 1
      %s20 = ssub.s32 %s14, 2
      %s21 = sadd.s32 %s14, 1
      %s22 = ssub.s32 %s14, %s21
      %p23 = scmp.eq.s32.totalorder %s22, 0
      %s25 = sadd.s32 %s24, 1
      %s26 = scalar_select %p23, %s24, %s25
      %p29 = pneg %p23
      %p30 = scmp.eq.s32.totalorder %s14, 1
      %p31 = por %p29, %p30
      %p32 = scmp.ne.s32.totalorder %s24, %s27
      %p33 = scmp.eq.s32.totalorder %s14, 0
      %p34 = por %p32, %p33
      %p35 = scmp.ne.s32.totalorder %s24, %s27
      %p36 = scmp.eq.s32.totalorder %s19, 1
      %p37 = por %p35, %p36
      %p38 = scmp.ne.s32.totalorder %s27, %s28
      %p39 = scmp.eq.s32.totalorder %s19, 0
      %p40 = por %p38, %p39
      %p41 = scmp.ne.s32.totalorder %s27, %s28
      %p42 = scmp.eq.s32.totalorder %s20, 1
      %p43 = por %p41, %p42
      %p45 = scmp.ne.s32.totalorder %s28, %s44
      %p46 = scmp.eq.s32.totalorder %s20, 0
      %p47 = por %p45, %p46
      %s49 = sadd.s32 %s48, 1
      %p52 = scmp.eq.s32.totalorder %s14, 1
      %p53 = scmp.ne.s32.totalorder %s48, %s50
      %p54 = scmp.eq.s32.totalorder %s14, 0
      %p55 = por %p53, %p54
      %p56 = scmp.ne.s32.totalorder %s48, %s50
      %p57 = scmp.eq.s32.totalorder %s19, 1
      %p58 = por %p56, %p57
      %p59 = scmp.ne.s32.totalorder %s50, %s51
      %p60 = scmp.eq.s32.totalorder %s19, 0
      %p61 = por %p59, %p60
      %p62 = scmp.ne.s32.totalorder %s50, %s51
      %p63 = scmp.eq.s32.totalorder %s20, 1
      %p64 = por %p62, %p63
      %p66 = scmp.ne.s32.totalorder %s51, %s65
      %p67 = scmp.eq.s32.totalorder %s20, 0
      %p68 = por %p66, %p67
      %s70 = sadd.s32 %s69, 1
      %p73 = scmp.eq.s32.totalorder %s14, 1
      %p74 = scmp.ne.s32.totalorder %s69, %s71
      %p75 = scmp.eq.s32.totalorder %s14, 0
      %p76 = por %p74, %p75
      %p77 = scmp.ne.s32.totalorder %s69, %s71
      %p78 = scmp.eq.s32.totalorder %s19, 1
      %p79 = por %p77, %p78
      %p80 = scmp.ne.s32.totalorder %s71, %s72
      %p81 = scmp.eq.s32.totalorder %s19, 0
      %p82 = por %p80, %p81
      %p83 = scmp.ne.s32.totalorder %s71, %s72
      %p84 = scmp.eq.s32.totalorder %s20, 1
      %p85 = por %p83, %p84
      %p87 = scmp.ne.s32.totalorder %s72, %s86
      %p88 = scmp.eq.s32.totalorder %s20, 0
      %p89 = por %p87, %p88
      %s91 = sadd.s32 %s90, 1
      %p94 = scmp.eq.s32.totalorder %s14, 1
      %p95 = scmp.ne.s32.totalorder %s90, %s92
      %p96 = scmp.eq.s32.totalorder %s14, 0
      %p97 = por %p95, %p96
      %p98 = scmp.ne.s32.totalorder %s90, %s92
      %p99 = scmp.eq.s32.totalorder %s19, 1
      %p100 = por %p98, %p99
      %p101 = scmp.ne.s32.totalorder %s92, %s93
      %p102 = scmp.eq.s32.totalorder %s19, 0
      %p103 = por %p101, %p102
      %p104 = scmp.ne.s32.totalorder %s92, %s93
      %p105 = scmp.eq.s32.totalorder %s20, 1
      %p106 = por %p104, %p105
      %p108 = scmp.ne.s32.totalorder %s93, %s107
      %p109 = scmp.eq.s32.totalorder %s20, 0
      %p110 = por %p108, %p109
      %s111 = ssub.s32 %s14, %s21
      %p112 = scmp.eq.s32.totalorder %s111, 0
      %s114 = sadd.s32 %s113, 1
      %s115 = scalar_select %p112, %s113, %s114
      %p118 = pneg %p112
      %p119 = scmp.eq.s32.totalorder %s14, 1
      %p120 = por %p118, %p119
      %p121 = scmp.ne.s32.totalorder %s113, %s116
      %p122 = scmp.eq.s32.totalorder %s14, 0
      %p123 = por %p121, %p122
      %p124 = scmp.ne.s32.totalorder %s113, %s116
      %p125 = scmp.eq.s32.totalorder %s19, 1
      %p126 = por %p124, %p125
      %p127 = scmp.ne.s32.totalorder %s116, %s117
      %p128 = scmp.eq.s32.totalorder %s19, 0
      %p129 = por %p127, %p128
      %p130 = scmp.ne.s32.totalorder %s116, %s117
      %p131 = scmp.eq.s32.totalorder %s20, 1
      %p132 = por %p130, %p131
      %p134 = scmp.ne.s32.totalorder %s117, %s133
      %p135 = scmp.eq.s32.totalorder %s20, 0
      %p136 = por %p134, %p135
      %p137 = scmp.le.s32.totalorder 1, %s14
      %p138 = scmp.lt.s32.totalorder %s14, 3
      %p139 = pnand %p137, %p138
      %p140 = pneg %p139
      // Predicated region
      $region9: #{tpu_custom_call.1} parent=5 // pred_check
        _
      $region10: #{tpu_custom_call.1} parent=5 // pred_check_branch
        %142 = sbr.rel (%p139) target = $region12
      $region11: #{tpu_custom_call.1} parent=5 // pred_region
        %s143 = ssub.s32 %s14, 1
        // Predicated region
        $region13: #{tpu_custom_call.1} parent=11 // pred_check
          %p144 = pneg %p61
        $region14: #{tpu_custom_call.1} parent=11 // pred_check_branch
          %146 = sbr.rel (%p144) target = $region16
        $region15: #{tpu_custom_call.1} parent=11 // pred_region
          _
        $region16: #{tpu_custom_call.1} parent=11 // pred_fallthru
          _
        // Predicated region
        $region17: #{tpu_custom_call.1} parent=11 // pred_check
          %p147 = pneg %p82
        $region18: #{tpu_custom_call.1} parent=11 // pred_check_branch
          %149 = sbr.rel (%p147) target = $region20
        $region19: #{tpu_custom_call.1} parent=11 // pred_region
          _
        $region20: #{tpu_custom_call.1} parent=11 // pred_fallthru
          _
        // Predicated region
        $region21: #{tpu_custom_call.1} parent=11 // pred_check
          %p150 = pneg %p103
        $region22: #{tpu_custom_call.1} parent=11 // pred_check_branch
          %152 = sbr.rel (%p150) target = $region24
        $region23: #{tpu_custom_call.1} parent=11 // pred_region
          %s154 = ssub.s32 2048, 2048
          %155 = vsyncadd [#allocation3], %s154
          %s156 = sshll.u32 [#allocation2], 4
          %s157 = int_to_ptr.vmem [resolvable:$true] %s156
          %162 = dma.hbm_to_vmem [thread:$0]  %s3, 2048, %s157, [#allocation3], 128, 128, 8
        $region24: #{tpu_custom_call.1} parent=11 // pred_fallthru
          _
      $region12: #{tpu_custom_call.1} parent=5 // pred_fallthru
        _
      %p163 = scmp.lt.s32.totalorder %s14, 2
      // Predicated region
      $region25: #{tpu_custom_call.1} parent=5 // pred_check
        %p164 = pneg %p163
      $region26: #{tpu_custom_call.1} parent=5 // pred_check_branch
        %166 = sbr.rel (%p164) target = $region28
      $region27: #{tpu_custom_call.1} parent=5 // pred_region
        // Predicated region
        $region29: #{tpu_custom_call.1} parent=27 // pred_check
          %p167 = pneg %p34
        $region30: #{tpu_custom_call.1} parent=27 // pred_check_branch
          %169 = sbr.rel (%p167) target = $region32
        $region31: #{tpu_custom_call.1} parent=27 // pred_region
          %p170 = scmp.lt.s32.totalorder %s14, 1
          %s171 = scalar_select %p170, %s14, 1
          %s172 = smul.addr %s171, 8
          %s173 = scalar_lea.vmem %s0, %s172
        $region32: #{tpu_custom_call.1} parent=27 // pred_fallthru
          _
      $region28: #{tpu_custom_call.1} parent=5 // pred_fallthru
        _
      %p174 = scmp.le.s32.totalorder 1, %s14
      %p175 = scmp.lt.s32.totalorder %s14, 3
      %p176 = pnand %p174, %p175
      %p177 = pneg %p176
      // Predicated region
      $region33: #{tpu_custom_call.1} parent=5 // pred_check
        _
      $region34: #{tpu_custom_call.1} parent=5 // pred_check_branch
        %179 = sbr.rel (%p176) target = $region36
      $region35: #{tpu_custom_call.1} parent=5 // pred_region
        %s180 = ssub.s32 %s14, 1
        // Predicated region
        $region37: #{tpu_custom_call.1} parent=35 // pred_check
          %p181 = pneg %p103
        $region38: #{tpu_custom_call.1} parent=35 // pred_check_branch
          %183 = sbr.rel (%p181) target = $region40
        $region39: #{tpu_custom_call.1} parent=35 // pred_region
          %184 = dma.done [#allocation3], 2048
        $region40: #{tpu_custom_call.1} parent=35 // pred_fallthru
          _
        %p185 = scmp.lt.s32.totalorder %s19, 1
        %s186 = scalar_select %p185, %s19, 1
        %s187 = smul.addr %s186, 8
        %s188 = scalar_lea.vmem %s0, %s187
        %p189 = pneg %p40
        %p190 = pneg %p37
        %p191 = pneg %p61
        %p192 = pneg %p58
        %p193 = pneg %p82
        %p194 = pneg %p79
        %p195 = pneg %p103
        %p196 = pneg %p100
        %p197 = pneg %p129
        %p198 = pneg %p126
        %s199 = sand.u32 %s116, 1
        %s200 = scalar_lea.sflag [#allocation4], %s199
        %s201 = sand.u32 %s116, 1
        %s202 = smul.addr %s201, 8
        %s203 = scalar_lea.vmem [#allocation5], %s202
        %p204 = scmp.lt.s32.totalorder %s19, 1
        %s205 = scalar_select %p204, %s19, 1
        %s206 = smul.addr %s205, 8
        %s207 = scalar_lea.vmem %s0, %s206
        %v208 = vld [vmem:[%s207] sm:$0xff]
        %v209 = vld [vmem:[%s1] sm:$0x1]
        %211 = vset.pattern.permute.xlu0 0
        %212 = vperm.xlu0 %211, %v208
        %v213 = vpop.permute.xlu0 %212
        %v215 = vlaneseq
        %v216 = vshrl.u32 %v215, 7
        %v217 = vsub.s32 0, %v216
        %v218 = vrot.slane %v209, %v217
        %v219 = vmul.f32 %v213, %v218
        %v220 = vld [vmem:[%s1 + $0x1] sm:$0x1]
        %221 = vset.pattern.permute.xlu0 1
        %222 = vperm.xlu0 %221, %v208
        %v223 = vpop.permute.xlu0 %222
        %v225 = vlaneseq
        %v226 = vshrl.u32 %v225, 7
        %v227 = vsub.s32 0, %v226
        %v228 = vrot.slane %v220, %v227
        %v229 = vmul.f32 %v223, %v228
        %v230 = vadd.f32 %v219, %v229
        %v231 = vld [vmem:[%s1 + $0x2] sm:$0x1]
        %232 = vset.pattern.permute.xlu0 2
        %233 = vperm.xlu0 %232, %v208
        %v234 = vpop.permute.xlu0 %233
        %v236 = vlaneseq
        %v237 = vshrl.u32 %v236, 7
        %v238 = vsub.s32 0, %v237
        %v239 = vrot.slane %v231, %v238
        %v240 = vmul.f32 %v234, %v239
        %v241 = vadd.f32 %v230, %v240
        %v242 = vld [vmem:[%s1 + $0x3] sm:$0x1]
        %243 = vset.pattern.permute.xlu0 3
        %244 = vperm.xlu0 %243, %v208
        %v245 = vpop.permute.xlu0 %244
        %v247 = vlaneseq
        %v248 = vshrl.u32 %v247, 7
        %v249 = vsub.s32 0, %v248
        %v250 = vrot.slane %v242, %v249
        %v251 = vmul.f32 %v245, %v250
        %v252 = vadd.f32 %v241, %v251
        %v253 = vld [vmem:[%s2] sm:$0x1]
        %v255 = vlaneseq
        %v256 = vshrl.u32 %v255, 7
        %v257 = vsub.s32 0, %v256
        %v258 = vrot.slane %v253, %v257
        %v260 = vadd.f32 %v252, %v258
        %v261 = vmax.f32 %v260, 0.0
        %v262 = vld [vmem:[#allocation2] sm:$0xff]
        %v263 = vld [vmem:[#allocation2 + $0x8] sm:$0xff]
        %v264 = vld [vmem:[#allocation2 + $0x10] sm:$0xff]
        %v265 = vld [vmem:[#allocation2 + $0x18] sm:$0xff]
        %v266 = vld [vmem:[#allocation2 + $0x20] sm:$0xff]
        %v267 = vld [vmem:[#allocation2 + $0x28] sm:$0xff]
        %v268 = vld [vmem:[#allocation2 + $0x30] sm:$0xff]
        %v269 = vld [vmem:[#allocation2 + $0x38] sm:$0xff]
        %v270 = vld [vmem:[#allocation2 + $0x40] sm:$0xff]
        %v271 = vld [vmem:[#allocation2 + $0x48] sm:$0xff]
        %v272 = vld [vmem:[#allocation2 + $0x50] sm:$0xff]
        %v273 = vld [vmem:[#allocation2 + $0x58] sm:$0xff]
        %v274 = vld [vmem:[#allocation2 + $0x60] sm:$0xff]
        %v275 = vld [vmem:[#allocation2 + $0x68] sm:$0xff]
        %v276 = vld [vmem:[#allocation2 + $0x70] sm:$0xff]
        %v277 = vld [vmem:[#allocation2 + $0x78] sm:$0xff]
        %278 = vmatprep.subr.mxu0 0.0
        %279 = vmatpush1.msra.mxu0 %v262
        %280 = vmatprep.subr.mxu0 0.0
        %281 = vmatpush1.msra.mxu0 %v263
        %282 = vmatprep.subr.mxu0 0.0
        %283 = vmatpush1.msra.mxu0 %v264
        %284 = vmatprep.subr.mxu0 0.0
        %285 = vmatpush1.msra.mxu0 %v265
        %286 = vmatprep.subr.mxu0 0.0
        %287 = vmatpush1.msra.mxu0 %v266
        %288 = vmatprep.subr.mxu0 0.0
        %289 = vmatpush1.msra.mxu0 %v267
        %290 = vmatprep.subr.mxu0 0.0
        %291 = vmatpush1.msra.mxu0 %v268
        %292 = vmatprep.subr.mxu0 0.0
        %293 = vmatpush1.msra.mxu0 %v269
        %294 = vmatprep.subr.mxu0 0.0
        %295 = vmatpush1.msra.mxu0 %v270
        %296 = vmatprep.subr.mxu0 0.0
        %297 = vmatpush1.msra.mxu0 %v271
        %298 = vmatprep.subr.mxu0 0.0
        %299 = vmatpush1.msra.mxu0 %v272
        %300 = vmatprep.subr.mxu0 0.0
        %301 = vmatpush1.msra.mxu0 %v273
        %302 = vmatprep.subr.mxu0 0.0
        %303 = vmatpush1.msra.mxu0 %v274
        %304 = vmatprep.subr.mxu0 0.0
        %305 = vmatpush1.msra.mxu0 %v275
        %306 = vmatprep.subr.mxu0 0.0
        %307 = vmatpush1.msra.mxu0 %v276
        %308 = vmatprep.subr.mxu0 0.0
        %309 = vmatpush1.msra.mxu0 %v277
        %310 = vmatprep.subr.mxu0 0.0
        %311 = vmatpush1.msra.mxu0 0.0
        %312 = vmatprep.subr.mxu0 0.0
        %313 = vmatpush1.msra.mxu0 0.0
        %314 = vmatprep.subr.mxu0 0.0
        %315 = vmatpush1.msra.mxu0 0.0
        %316 = vmatprep.subr.mxu0 0.0
        %317 = vmatpush1.msra.mxu0 0.0
        %318 = vmatprep.subr.mxu0 0.0
        %319 = vmatpush1.msra.mxu0 0.0
        %320 = vmatprep.subr.mxu0 0.0
        %321 = vmatpush1.msra.mxu0 0.0
        %322 = vmatprep.subr.mxu0 0.0
        %323 = vmatpush1.msra.mxu0 0.0
        %324 = vmatprep.subr.mxu0 0.0
        %325 = vmatpush1.msra.mxu0 0.0
        %326 = vmatprep.subr.mxu0 0.0
        %327 = vmatpush1.msra.mxu0 0.0
        %328 = vmatprep.subr.mxu0 0.0
        %329 = vmatpush1.msra.mxu0 0.0
        %330 = vmatprep.subr.mxu0 0.0
        %331 = vmatpush1.msra.mxu0 0.0
        %332 = vmatprep.subr.mxu0 0.0
        %333 = vmatpush1.msra.mxu0 0.0
        %334 = vmatprep.subr.mxu0 0.0
        %335 = vmatpush1.msra.mxu0 0.0
        %336 = vmatprep.subr.mxu0 0.0
        %337 = vmatpush1.msra.mxu0 0.0
        %338 = vmatprep.subr.mxu0 0.0
        %339 = vmatpush1.msra.mxu0 0.0
        %340 = vmatprep.subr.mxu0 0.0
        %341 = vmatpush1.msra.mxu0 0.0
        %342 = vmatprep.mubr.f32.mxu0 0.0
        %343 = vmatmul.mubr.f32.gmra.mrb[0].mxu0 %v261
        %v344 = vpop.f32.mrb[0].mxu0
        %v345 = vadd.f32 0.0, %v344
        %v346 = vpop.f32.mrb[0].mxu0
        %347 = vdwg.mxu0
        %348 = vst [vmem:[%s203] sm:$0xff] %v345
        %s349 = sand.u32 %s116, 1
        %s350 = scalar_lea.sflag [#allocation4], %s349
        %s351 = sand.u32 %s116, 1
        %s352 = smul.addr %s351, 8
        %s353 = scalar_lea.vmem [#allocation5], %s352
        // Predicated region
        $region41: #{tpu_custom_call.1} parent=35 // pred_check
          %p354 = pneg %p126
        $region42: #{tpu_custom_call.1} parent=35 // pred_check_branch
          %356 = sbr.rel (%p354) target = $region44
        $region43: #{tpu_custom_call.1} parent=35 // pred_region
          %s358 = ssub.s32 128, 128
          %359 = vsyncadd %s350, %s358
          %s360 = smul.addr %s19, 128
          %s361 = scalar_lea.hbm %s4, %s360
          %s363 = sshll.u32 %s353, 4
          %s364 = int_to_ptr.vmem [resolvable:$true] %s363
          %366 = dma.vmem_to_hbm [thread:$0]  %s364, 128, %s361, %s350
        $region44: #{tpu_custom_call.1} parent=35 // pred_fallthru
          _
      $region36: #{tpu_custom_call.1} parent=5 // pred_fallthru
        _
      %p367 = scmp.le.s32.totalorder 2, %s14
      // Predicated region
      $region45: #{tpu_custom_call.1} parent=5 // pred_check
        %p368 = pneg %p367
      $region46: #{tpu_custom_call.1} parent=5 // pred_check_branch
        %370 = sbr.rel (%p368) target = $region48
      $region47: #{tpu_custom_call.1} parent=5 // pred_region
        %s371 = ssub.s32 %s14, 2
        // Predicated region
        $region49: #{tpu_custom_call.1} parent=47 // pred_check
          %p372 = pneg %p132
        $region50: #{tpu_custom_call.1} parent=47 // pred_check_branch
          %374 = sbr.rel (%p372) target = $region52
        $region51: #{tpu_custom_call.1} parent=47 // pred_region
          %s375 = sand.u32 %s117, 1
          %s376 = scalar_lea.sflag [#allocation4], %s375
          %s377 = sand.u32 %s117, 1
          %s378 = smul.addr %s377, 8
          %s379 = scalar_lea.vmem [#allocation5], %s378
          %380 = dma.done %s376, 128
        $region52: #{tpu_custom_call.1} parent=47 // pred_fallthru
          _
      $region48: #{tpu_custom_call.1} parent=5 // pred_fallthru
        _
    $region6: #{tpu_custom_call.1} parent=1 // loop_footer
      %s18 = sadd.s32 1, %s14
    $region7: #{tpu_custom_call.1} parent=1 // loop_footer_branch
      %13 = sbr.rel target = $region3
    $region8: #{tpu_custom_call.1} parent=1 // loop_exit
      _
    %381 = vsyncpa [#allocation3], 1
    %s382 = scalar_lea.sflag [#allocation3], 1
    %383 = vsyncpa %s382, 1
    %384 = vsyncpa [#allocation4], 1
    %s385 = scalar_lea.sflag [#allocation4], 1
    %386 = vsyncpa %s385, 1

</llo_original>
